<compile_context>
chip_gen: v6e
topology: v6e:2x2x1
jax: 0.10.0
libtpu: 0.0.40
codegen_flags: <defaults>
</compile_context>

<pallas_src>
import jax
import jax.numpy as jnp
from jax.experimental import pallas as pl
from jax.experimental.pallas import tpu as pltpu


def _round_up(x: int, m: int) -> int:
    return ((x + m - 1) // m) * m


def mlp_body_kernel(x_ref, w1_ref, b1_ref, w2_ref, b2_ref, o_ref):
    # x_ref: [TB, in_dim] f32, w1_ref: [in_dim, 256] bf16, b1_ref: [1, 256] f32
    # w2_ref: [256, feat] bf16, b2_ref: [1, feat] f32, o_ref: [TB, feat] f32/bf16
    x = x_ref[...].astype(jnp.bfloat16)          # in-kernel cast (VPU, hidden)
    h = jnp.dot(x, w1_ref[...], preferred_element_type=jnp.float32)
    h = jnp.maximum(h + b1_ref[...], 0.0)        # f32 bias + ReLU on the VPU
    y = jnp.dot(h.astype(jnp.bfloat16), w2_ref[...],
                preferred_element_type=jnp.float32)
    o_ref[...] = (y + b2_ref[...]).astype(o_ref.dtype)


def _choose_tiling(B: int, block_b: int):
    """Sublane-aligned batch tile, capped at block_b, with >= 2 grid steps."""
    n = max(2, pl.cdiv(B, block_b))              # >=2 so v7x uses both TCs
    tb = min(block_b, _round_up(pl.cdiv(B, n), 8))
    n = max(2, pl.cdiv(B, tb))
    return tb, n, n * tb


def mlp_body_forward(x, w1, b1, w2, b2, *, block_b: int = 1024,
                     out_dtype=jnp.float32):
    """x: [B, in_dim] -> [B, feature_dim] in `out_dtype`.

    w1: [in_dim, hidden], b1: [1, hidden], w2: [hidden, feat], b2: [1, feat].
    Weights should already be bf16 (cast once at init); biases stay f32.
    """
    B, in_dim = x.shape
    hidden = w1.shape[1]
    feat = w2.shape[1]
    assert w1.shape == (in_dim, hidden)
    assert w2.shape == (hidden, feat)
    assert b1.shape == (1, hidden) and b2.shape == (1, feat)

    # Cast weights only if the caller did not pre-cast (params are cached in
    # bf16 by init_mlp_body_params, so normally this is a no-op).
    w1_bf = w1 if w1.dtype == jnp.bfloat16 else w1.astype(jnp.bfloat16)
    w2_bf = w2 if w2.dtype == jnp.bfloat16 else w2.astype(jnp.bfloat16)
    b1_f = b1.astype(jnp.float32)
    b2_f = b2.astype(jnp.float32)
    x = x.astype(jnp.float32)                    # stays f32; kernel casts

    tb, n_steps, b_pad = _choose_tiling(B, block_b)
    if b_pad != B:
        x = jnp.pad(x, ((0, b_pad - B), (0, 0)))

    grid = (n_steps,)
    out_bytes = jnp.dtype(out_dtype).itemsize

    flops = 2 * b_pad * (in_dim * hidden + hidden * feat)
    bytes_accessed = (
        b_pad * in_dim * 4            # x (f32 in HBM)
        + in_dim * hidden * 2         # w1 (bf16)
        + hidden * feat * 2           # w2 (bf16)
        + hidden * 4 + feat * 4       # biases (f32)
        + b_pad * feat * out_bytes    # out
    )

    out = pl.pallas_call(
        mlp_body_kernel,
        out_shape=jax.ShapeDtypeStruct((b_pad, feat), out_dtype),
        grid=grid,
        in_specs=[
            # activations stream, tiled over batch
            pl.BlockSpec((tb, in_dim), lambda i: (i, 0)),
            # weights / biases resident across all grid steps
            pl.BlockSpec((in_dim, hidden), lambda i: (0, 0)),
            pl.BlockSpec((1, hidden), lambda i: (0, 0)),
            pl.BlockSpec((hidden, feat), lambda i: (0, 0)),
            pl.BlockSpec((1, feat), lambda i: (0, 0)),
        ],
        out_specs=pl.BlockSpec((tb, feat), lambda i: (i, 0)),
        compiler_params=pltpu.CompilerParams(
            dimension_semantics=("parallel",),
            vmem_limit_bytes=32 * 1024 * 1024,   # keeps big tiles legal on v5e
        ),
        cost_estimate=pl.CostEstimate(
            flops=flops, transcendentals=0, bytes_accessed=bytes_accessed),
    )(x, w1_bf, b1_f, w2_bf, b2_f)

    return out[:B]


def init_mlp_body_params(key, in_dim, feature_dim=256, hidden=256):
    """Deterministic init mimicking nn.Linear's uniform(-1/sqrt(fan_in), ...).

    Weights are returned pre-cast to bf16 (cast once here, not per forward);
    biases stay f32 for the f32 epilogue.
    """
    k1, k2, k3, k4 = jax.random.split(key, 4)
    lim1 = 1.0 / jnp.sqrt(jnp.float32(in_dim))
    lim2 = 1.0 / jnp.sqrt(jnp.float32(hidden))
    w1 = jax.random.uniform(k1, (in_dim, hidden), jnp.float32, -lim1, lim1)
    b1 = jax.random.uniform(k2, (1, hidden), jnp.float32, -lim1, lim1)
    w2 = jax.random.uniform(k3, (hidden, feature_dim), jnp.float32, -lim2, lim2)
    b2 = jax.random.uniform(k4, (1, feature_dim), jnp.float32, -lim2, lim2)
    return w1.astype(jnp.bfloat16), b1, w2.astype(jnp.bfloat16), b2


def _reference(x, w1_bf, b1, w2_bf, b2):
    """Pure-JAX reference with the same bf16-into-MXU / f32-accumulate scheme."""
    xb = x.astype(jnp.bfloat16).astype(jnp.float32)
    w1f = w1_bf.astype(jnp.float32)
    w2f = w2_bf.astype(jnp.float32)
    h = jnp.maximum(xb @ w1f + b1, 0.0)
    hb = h.astype(jnp.bfloat16).astype(jnp.float32)
    return hb @ w2f + b2


if __name__ == "__main__":
    key = jax.random.PRNGKey(0)
    kx, kp = jax.random.split(key)

    in_dim = 32          # input_shape = (32,)
    feature_dim = 256    # module default
    w1, b1, w2, b2 = init_mlp_body_params(kp, in_dim, feature_dim)

    # Small-shape check (B=8 -> tb=8, grid=(2,) so v7x gets both cores).
    batch = 8
    x = jax.random.normal(kx, (batch, in_dim), jnp.float32)
    out = jax.block_until_ready(mlp_body_forward(x, w1, b1, w2, b2))
    ref = _reference(x, w1, b1, w2, b2)
    assert out.shape == (batch, feature_dim)
    assert out.dtype == jnp.float32
    assert jnp.allclose(out, ref, atol=1e-2, rtol=1e-2)

    # Exercise the batch-tiled + padded path (B=300 -> tb=152, grid=(2,)).
    batch2 = 300
    x2 = jax.random.normal(kx, (batch2, in_dim), jnp.float32)
    out2 = jax.block_until_ready(mlp_body_forward(x2, w1, b1, w2, b2))
    ref2 = _reference(x2, w1, b1, w2, b2)
    assert out2.shape == (batch2, feature_dim)
    assert jnp.allclose(out2, ref2, atol=1e-2, rtol=1e-2)

    # Optional bf16-output path (HBM-bandwidth win for large B).
    out3 = jax.block_until_ready(
        mlp_body_forward(x2, w1, b1, w2, b2, out_dtype=jnp.bfloat16))
    assert out3.shape == (batch2, feature_dim)
    assert out3.dtype == jnp.bfloat16
    assert jnp.allclose(out3.astype(jnp.float32), ref2, atol=5e-2, rtol=5e-2)

    print("KERNEL_OK")
</pallas_src>

<mosaic_0001>
module attributes {stable_mosaic.version = 11 : i64} {
  func.func @mlp_body_kernel(%arg0: i32, %arg1: memref<8x32xf32, #tpu.memory_space<vmem>>, %arg2: memref<32x256xbf16, #tpu.memory_space<vmem>>, %arg3: memref<1x256xf32, #tpu.memory_space<vmem>>, %arg4: memref<256x256xbf16, #tpu.memory_space<vmem>>, %arg5: memref<1x256xf32, #tpu.memory_space<vmem>>, %arg6: memref<8x256xf32, #tpu.memory_space<vmem>>) attributes {dimension_semantics = [#tpu.dimension_semantics<parallel>], iteration_bounds = array<i64: 2>, scalar_prefetch = 0 : i64, scratch_operands = 0 : i64, tpu.core_type = #tpu.core_type<tc>, window_params = [{transform_indices = @transform_0, window_bounds = array<i64: 8, 32>}, {pipeline_mode = #tpu.pipeline_mode<synchronous>, transform_indices = @transform_1, window_bounds = array<i64: 32, 256>}, {pipeline_mode = #tpu.pipeline_mode<synchronous>, transform_indices = @transform_2, window_bounds = array<i64: 1, 256>}, {pipeline_mode = #tpu.pipeline_mode<synchronous>, transform_indices = @transform_3, window_bounds = array<i64: 256, 256>}, {pipeline_mode = #tpu.pipeline_mode<synchronous>, transform_indices = @transform_4, window_bounds = array<i64: 1, 256>}, {transform_indices = @transform_5, window_bounds = array<i64: 8, 256>}]} {
    %c0 = arith.constant 0 : index
    %c0_0 = arith.constant 0 : index
    %0 = vector.load %arg1[%c0, %c0_0] : memref<8x32xf32, #tpu.memory_space<vmem>>, vector<8x32xf32>
    %1 = arith.truncf %0 : vector<8x32xf32> to vector<8x32xbf16>
    %c0_1 = arith.constant 0 : index
    %c0_2 = arith.constant 0 : index
    %2 = vector.load %arg2[%c0_1, %c0_2] : memref<32x256xbf16, #tpu.memory_space<vmem>>, vector<32x256xbf16>
    %cst = arith.constant dense<0.000000e+00> : vector<8x256xf32>
    %3 = tpu.matmul %1, %2, %cst {dimension_numbers = #tpu.dot_dimension_numbers<[1], [0], [0], [1], [0, 0, 1, 1], [], []>} : vector<8x32xbf16>, vector<32x256xbf16>, vector<8x256xf32> -> vector<8x256xf32>
    %c0_3 = arith.constant 0 : index
    %c0_4 = arith.constant 0 : index
    %4 = vector.load %arg3[%c0_3, %c0_4] : memref<1x256xf32, #tpu.memory_space<vmem>>, vector<1x256xf32>
    %5 = vector.broadcast %4 : vector<1x256xf32> to vector<8x256xf32>
    %6 = arith.addf %3, %5 : vector<8x256xf32>
    %cst_5 = arith.constant 0.000000e+00 : f32
    %7 = vector.broadcast %cst_5 : f32 to vector<8x256xf32>
    %8 = arith.maximumf %6, %7 : vector<8x256xf32>
    %9 = arith.truncf %8 : vector<8x256xf32> to vector<8x256xbf16>
    %c0_6 = arith.constant 0 : index
    %c0_7 = arith.constant 0 : index
    %10 = vector.load %arg4[%c0_6, %c0_7] : memref<256x256xbf16, #tpu.memory_space<vmem>>, vector<256x256xbf16>
    %cst_8 = arith.constant dense<0.000000e+00> : vector<8x256xf32>
    %11 = tpu.matmul %9, %10, %cst_8 {dimension_numbers = #tpu.dot_dimension_numbers<[1], [0], [0], [1], [0, 0, 1, 1], [], []>} : vector<8x256xbf16>, vector<256x256xbf16>, vector<8x256xf32> -> vector<8x256xf32>
    %c0_9 = arith.constant 0 : index
    %c0_10 = arith.constant 0 : index
    %12 = vector.load %arg5[%c0_9, %c0_10] : memref<1x256xf32, #tpu.memory_space<vmem>>, vector<1x256xf32>
    %13 = vector.broadcast %12 : vector<1x256xf32> to vector<8x256xf32>
    %14 = arith.addf %11, %13 : vector<8x256xf32>
    %c0_11 = arith.constant 0 : index
    %c0_12 = arith.constant 0 : index
    %15 = vector.load %arg6[%c0_11, %c0_12] : memref<8x256xf32, #tpu.memory_space<vmem>>, vector<8x256xf32>
    tpu.vector_store %arg6[%c0_11, %c0_12], %14 {strides = array<i32>} : memref<8x256xf32, #tpu.memory_space<vmem>>, vector<8x256xf32>,
    return
  }
  func.func @transform_0(%arg0: i32) -> (i32, i32) {
    %c0_i32 = arith.constant 0 : i32
    %c0_i32_0 = arith.constant 0 : i32
    return %arg0, %c0_i32 : i32, i32
  }
  func.func @transform_1(%arg0: i32) -> (i32, i32) {
    %c0_i32 = arith.constant 0 : i32
    %c0_i32_0 = arith.constant 0 : i32
    %c0_i32_1 = arith.constant 0 : i32
    return %c0_i32, %c0_i32_0 : i32, i32
  }
  func.func @transform_2(%arg0: i32) -> (i32, i32) {
    %c0_i32 = arith.constant 0 : i32
    %c0_i32_0 = arith.constant 0 : i32
    %c0_i32_1 = arith.constant 0 : i32
    return %c0_i32, %c0_i32_0 : i32, i32
  }
  func.func @transform_3(%arg0: i32) -> (i32, i32) {
    %c0_i32 = arith.constant 0 : i32
    %c0_i32_0 = arith.constant 0 : i32
    %c0_i32_1 = arith.constant 0 : i32
    return %c0_i32, %c0_i32_0 : i32, i32
  }
  func.func @transform_4(%arg0: i32) -> (i32, i32) {
    %c0_i32 = arith.constant 0 : i32
    %c0_i32_0 = arith.constant 0 : i32
    %c0_i32_1 = arith.constant 0 : i32
    return %c0_i32, %c0_i32_0 : i32, i32
  }
  func.func @transform_5(%arg0: i32) -> (i32, i32) {
    %c0_i32 = arith.constant 0 : i32
    %c0_i32_0 = arith.constant 0 : i32
    return %arg0, %c0_i32 : i32, i32
  }
}

</mosaic_0001>

<llo_original>
// kernel: tpu_custom_call.1
$region0: #{tpu_custom_call.1}
  #allocation0 [shape = 'u32[]', space=smem, size = 0x4, offset = 0x4, fixed_abs, tag = 'smem constant byte address 0x4 - core index']
  #allocation1 [shape = 'u32[144,128]{1,0:T(1,128)}', space=vmem, size = 0x12000, scoped, tag = 'internal scratch']
  %s0 = inlined_call_operand.hbm [shape: f32[16,32], index: 0, kind: input, shape index: {}]
  %s1 = inlined_call_operand.hbm [shape: bf16[32,256], index: 1, kind: input, shape index: {}]
  %s2 = inlined_call_operand.vmem [shape: f32[1,256], index: 2, kind: input, shape index: {}]
  %s3 = inlined_call_operand.hbm [shape: bf16[256,256], index: 3, kind: input, shape index: {}]
  %s4 = inlined_call_operand.vmem [shape: f32[1,256], index: 4, kind: input, shape index: {}]
  %s5 = inlined_call_operand.hbm [shape: f32[16,256], index: 5, kind: output, shape index: {}]
  %s6 = sld [smem:[#allocation0]]
  $region65: #{tpu_custom_call.1} parent=0
    _
  %s8 = ssub.s32 1, %s6
  %s9 = scalar_select 0, %s8, %s6
  $region1: #{tpu_custom_call.1} parent=0
    #allocation2 [shape = 'u8[8192]{0}', space=vmem, size = 0x2000, scoped, tag = 'input window, operand 0']
    #allocation3 [shape = 's32[2]{0}', space=sflag, size = 0x8, scoped, tag = 'scoped memory for tpu_custom_call.1']
    #allocation4 [shape = 's32[2]{0}', space=sflag, size = 0x8, scoped, tag = 'scoped memory for tpu_custom_call.1']
    #allocation5 [shape = 'u8[16384]{0}', space=vmem, size = 0x4000, scoped, tag = 'input window, operand 1, single buffered']
    #allocation6 [shape = 's32[1]{0}', space=sflag, size = 0x4, scoped, tag = 'scoped memory for tpu_custom_call.1']
    #allocation7 [shape = 'u8[131072]{0}', space=vmem, size = 0x20000, scoped, tag = 'input window, operand 3, single buffered']
    #allocation8 [shape = 'u8[16384]{0}', space=vmem, size = 0x4000, scoped, tag = 'output window, operand 0']
    %10 = vsyncpa [#allocation3], 0
    %s11 = scalar_lea.sflag [#allocation3], 1
    %12 = vsyncpa %s11, 0
    %13 = vsyncpa [#allocation6], 0
    %14 = vsyncpa [#allocation4], 0
    %s15 = scalar_lea.sflag [#allocation4], 1
    %16 = vsyncpa %s15, 0
    loop: start=0, step=1, limit=4
    $region2: #{tpu_custom_call.1} parent=1 // loop_pre_header
      _
    $region3: #{tpu_custom_call.1} parent=1 // loop_header
      %s18 = sphi 0, %s22
      %p19 = scmp.ge.s32.totalorder %s18, 4
      %s28 = sphi 0, %s30
      %s31 = sphi 0, %s28
      %s32 = sphi 0, %s31
      %s48 = sphi 0, %s32
      %s52 = sphi 0, %s52
      %s54 = sphi 0, %s52
      %s55 = sphi 0, %s54
      %s69 = sphi 0, %s55
      %s73 = sphi 0, %s73
      %s75 = sphi 0, %s73
      %s76 = sphi 0, %s75
      %s90 = sphi 0, %s76
      %s94 = sphi 0, %s94
      %s96 = sphi 0, %s94
      %s97 = sphi 0, %s96
      %s111 = sphi 0, %s97
      %s115 = sphi 0, %s115
      %s117 = sphi 0, %s115
      %s118 = sphi 0, %s117
      %s132 = sphi 0, %s118
      %s138 = sphi 0, %s140
      %s141 = sphi 0, %s138
      %s142 = sphi 0, %s141
      %s158 = sphi 0, %s142
    $region4: #{tpu_custom_call.1} parent=1 // loop_header_branch
      %21 = sbr.rel (%p19) target = $region8
    $region5: #{tpu_custom_call.1} parent=1 // loop_body
      %s23 = ssub.s32 %s18, 1
      %s24 = ssub.s32 %s18, 2
      %s25 = sadd.s32 %s18, 1
      %s26 = ssub.s32 %s18, %s25
      %p27 = scmp.eq.s32.totalorder %s26, 0
      %s29 = sadd.s32 %s28, 1
      %s30 = scalar_select %p27, %s28, %s29
      %p33 = pneg %p27
      %p34 = scmp.eq.s32.totalorder %s18, 1
      %p35 = por %p33, %p34
      %p36 = scmp.ne.s32.totalorder %s28, %s31
      %p37 = scmp.eq.s32.totalorder %s18, 0
      %p38 = por %p36, %p37
      %p39 = scmp.ne.s32.totalorder %s28, %s31
      %p40 = scmp.eq.s32.totalorder %s23, 1
      %p41 = por %p39, %p40
      %p42 = scmp.ne.s32.totalorder %s31, %s32
      %p43 = scmp.eq.s32.totalorder %s23, 0
      %p44 = por %p42, %p43
      %p45 = scmp.ne.s32.totalorder %s31, %s32
      %p46 = scmp.eq.s32.totalorder %s24, 1
      %p47 = por %p45, %p46
      %p49 = scmp.ne.s32.totalorder %s32, %s48
      %p50 = scmp.eq.s32.totalorder %s24, 0
      %p51 = por %p49, %p50
      %s53 = sadd.s32 %s52, 1
      %p56 = scmp.eq.s32.totalorder %s18, 1
      %p57 = scmp.ne.s32.totalorder %s52, %s54
      %p58 = scmp.eq.s32.totalorder %s18, 0
      %p59 = por %p57, %p58
      %p60 = scmp.ne.s32.totalorder %s52, %s54
      %p61 = scmp.eq.s32.totalorder %s23, 1
      %p62 = por %p60, %p61
      %p63 = scmp.ne.s32.totalorder %s54, %s55
      %p64 = scmp.eq.s32.totalorder %s23, 0
      %p65 = por %p63, %p64
      %p66 = scmp.ne.s32.totalorder %s54, %s55
      %p67 = scmp.eq.s32.totalorder %s24, 1
      %p68 = por %p66, %p67
      %p70 = scmp.ne.s32.totalorder %s55, %s69
      %p71 = scmp.eq.s32.totalorder %s24, 0
      %p72 = por %p70, %p71
      %s74 = sadd.s32 %s73, 1
      %p77 = scmp.eq.s32.totalorder %s18, 1
      %p78 = scmp.ne.s32.totalorder %s73, %s75
      %p79 = scmp.eq.s32.totalorder %s18, 0
      %p80 = por %p78, %p79
      %p81 = scmp.ne.s32.totalorder %s73, %s75
      %p82 = scmp.eq.s32.totalorder %s23, 1
      %p83 = por %p81, %p82
      %p84 = scmp.ne.s32.totalorder %s75, %s76
      %p85 = scmp.eq.s32.totalorder %s23, 0
      %p86 = por %p84, %p85
      %p87 = scmp.ne.s32.totalorder %s75, %s76
      %p88 = scmp.eq.s32.totalorder %s24, 1
      %p89 = por %p87, %p88
      %p91 = scmp.ne.s32.totalorder %s76, %s90
      %p92 = scmp.eq.s32.totalorder %s24, 0
      %p93 = por %p91, %p92
      %s95 = sadd.s32 %s94, 1
      %p98 = scmp.eq.s32.totalorder %s18, 1
      %p99 = scmp.ne.s32.totalorder %s94, %s96
      %p100 = scmp.eq.s32.totalorder %s18, 0
      %p101 = por %p99, %p100
      %p102 = scmp.ne.s32.totalorder %s94, %s96
      %p103 = scmp.eq.s32.totalorder %s23, 1
      %p104 = por %p102, %p103
      %p105 = scmp.ne.s32.totalorder %s96, %s97
      %p106 = scmp.eq.s32.totalorder %s23, 0
      %p107 = por %p105, %p106
      %p108 = scmp.ne.s32.totalorder %s96, %s97
      %p109 = scmp.eq.s32.totalorder %s24, 1
      %p110 = por %p108, %p109
      %p112 = scmp.ne.s32.totalorder %s97, %s111
      %p113 = scmp.eq.s32.totalorder %s24, 0
      %p114 = por %p112, %p113
      %s116 = sadd.s32 %s115, 1
      %p119 = scmp.eq.s32.totalorder %s18, 1
      %p120 = scmp.ne.s32.totalorder %s115, %s117
      %p121 = scmp.eq.s32.totalorder %s18, 0
      %p122 = por %p120, %p121
      %p123 = scmp.ne.s32.totalorder %s115, %s117
      %p124 = scmp.eq.s32.totalorder %s23, 1
      %p125 = por %p123, %p124
      %p126 = scmp.ne.s32.totalorder %s117, %s118
      %p127 = scmp.eq.s32.totalorder %s23, 0
      %p128 = por %p126, %p127
      %p129 = scmp.ne.s32.totalorder %s117, %s118
      %p130 = scmp.eq.s32.totalorder %s24, 1
      %p131 = por %p129, %p130
      %p133 = scmp.ne.s32.totalorder %s118, %s132
      %p134 = scmp.eq.s32.totalorder %s24, 0
      %p135 = por %p133, %p134
      %s136 = ssub.s32 %s18, %s25
      %p137 = scmp.eq.s32.totalorder %s136, 0
      %s139 = sadd.s32 %s138, 1
      %s140 = scalar_select %p137, %s138, %s139
      %p143 = pneg %p137
      %p144 = scmp.eq.s32.totalorder %s18, 1
      %p145 = por %p143, %p144
      %p146 = scmp.ne.s32.totalorder %s138, %s141
      %p147 = scmp.eq.s32.totalorder %s18, 0
      %p148 = por %p146, %p147
      %p149 = scmp.ne.s32.totalorder %s138, %s141
      %p150 = scmp.eq.s32.totalorder %s23, 1
      %p151 = por %p149, %p150
      %p152 = scmp.ne.s32.totalorder %s141, %s142
      %p153 = scmp.eq.s32.totalorder %s23, 0
      %p154 = por %p152, %p153
      %p155 = scmp.ne.s32.totalorder %s141, %s142
      %p156 = scmp.eq.s32.totalorder %s24, 1
      %p157 = por %p155, %p156
      %p159 = scmp.ne.s32.totalorder %s142, %s158
      %p160 = scmp.eq.s32.totalorder %s24, 0
      %p161 = por %p159, %p160
      %p162 = scmp.le.s32.totalorder 1, %s18
      %p163 = scmp.lt.s32.totalorder %s18, 3
      %p164 = pnand %p162, %p163
      %p165 = pneg %p164
      // Predicated region
      $region9: #{tpu_custom_call.1} parent=5 // pred_check
        _
      $region10: #{tpu_custom_call.1} parent=5 // pred_check_branch
        %167 = sbr.rel (%p164) target = $region12
      $region11: #{tpu_custom_call.1} parent=5 // pred_region
        %s168 = ssub.s32 %s18, 1
        // Predicated region
        $region13: #{tpu_custom_call.1} parent=11 // pred_check
          %p169 = pneg %p65
        $region14: #{tpu_custom_call.1} parent=11 // pred_check_branch
          %171 = sbr.rel (%p169) target = $region16
        $region15: #{tpu_custom_call.1} parent=11 // pred_region
          %s173 = ssub.s32 512, 512
          %174 = vsyncadd [#allocation6], %s173
          %s175 = sshll.u32 [#allocation5], 4
          %s176 = int_to_ptr.vmem [resolvable:$true] %s175
          %181 = dma.hbm_to_vmem [thread:$0]  %s1, 512, %s176, [#allocation6], 128, 128, 8
        $region16: #{tpu_custom_call.1} parent=11 // pred_fallthru
          _
        // Predicated region
        $region17: #{tpu_custom_call.1} parent=11 // pred_check
          %p182 = pneg %p86
        $region18: #{tpu_custom_call.1} parent=11 // pred_check_branch
          %184 = sbr.rel (%p182) target = $region20
        $region19: #{tpu_custom_call.1} parent=11 // pred_region
          _
        $region20: #{tpu_custom_call.1} parent=11 // pred_fallthru
          _
        // Predicated region
        $region21: #{tpu_custom_call.1} parent=11 // pred_check
          %p185 = pneg %p107
        $region22: #{tpu_custom_call.1} parent=11 // pred_check_branch
          %187 = sbr.rel (%p185) target = $region24
        $region23: #{tpu_custom_call.1} parent=11 // pred_region
          %s189 = ssub.s32 4096, 4096
          %190 = vsyncadd [#allocation6], %s189
          %s191 = sshll.u32 [#allocation7], 4
          %s192 = int_to_ptr.vmem [resolvable:$true] %s191
          %197 = dma.hbm_to_vmem [thread:$0]  %s3, 4096, %s192, [#allocation6], 128, 128, 8
        $region24: #{tpu_custom_call.1} parent=11 // pred_fallthru
          _
        // Predicated region
        $region25: #{tpu_custom_call.1} parent=11 // pred_check
          %p198 = pneg %p128
        $region26: #{tpu_custom_call.1} parent=11 // pred_check_branch
          %200 = sbr.rel (%p198) target = $region28
        $region27: #{tpu_custom_call.1} parent=11 // pred_region
          _
        $region28: #{tpu_custom_call.1} parent=11 // pred_fallthru
          _
      $region12: #{tpu_custom_call.1} parent=5 // pred_fallthru
        _
      %p201 = scmp.lt.s32.totalorder %s18, 2
      // Predicated region
      $region29: #{tpu_custom_call.1} parent=5 // pred_check
        %p202 = pneg %p201
      $region30: #{tpu_custom_call.1} parent=5 // pred_check_branch
        %204 = sbr.rel (%p202) target = $region32
      $region31: #{tpu_custom_call.1} parent=5 // pred_region
        // Predicated region
        $region33: #{tpu_custom_call.1} parent=31 // pred_check
          %p205 = pneg %p38
        $region34: #{tpu_custom_call.1} parent=31 // pred_check_branch
          %207 = sbr.rel (%p205) target = $region36
        $region35: #{tpu_custom_call.1} parent=31 // pred_region
          %s208 = sand.u32 %s28, 1
          %s209 = scalar_lea.sflag [#allocation3], %s208
          %s210 = sand.u32 %s28, 1
          %s211 = smul.addr %s210, 8
          %s212 = scalar_lea.vmem [#allocation2], %s211
          %s214 = ssub.s32 128, 128
          %215 = vsyncadd %s209, %s214
          %s216 = smul.addr %s18, 128
          %s217 = scalar_lea.hbm %s0, %s216
          %s219 = sshll.u32 %s212, 4
          %s220 = int_to_ptr.vmem [resolvable:$true] %s219
          %222 = dma.hbm_to_vmem [thread:$0]  %s217, 128, %s220, %s209
        $region36: #{tpu_custom_call.1} parent=31 // pred_fallthru
          _
      $region32: #{tpu_custom_call.1} parent=5 // pred_fallthru
        _
      %p223 = scmp.le.s32.totalorder 1, %s18
      %p224 = scmp.lt.s32.totalorder %s18, 3
      %p225 = pnand %p223, %p224
      %p226 = pneg %p225
      // Predicated region
      $region37: #{tpu_custom_call.1} parent=5 // pred_check
        _
      $region38: #{tpu_custom_call.1} parent=5 // pred_check_branch
        %228 = sbr.rel (%p225) target = $region40
      $region39: #{tpu_custom_call.1} parent=5 // pred_region
        %s229 = ssub.s32 %s18, 1
        %s230 = sand.u32 %s31, 1
        %s231 = scalar_lea.sflag [#allocation3], %s230
        %s232 = sand.u32 %s31, 1
        %s233 = smul.addr %s232, 8
        %s234 = scalar_lea.vmem [#allocation2], %s233
        // Predicated region
        $region41: #{tpu_custom_call.1} parent=39 // pred_check
          %p235 = pneg %p44
        $region42: #{tpu_custom_call.1} parent=39 // pred_check_branch
          %237 = sbr.rel (%p235) target = $region44
        $region43: #{tpu_custom_call.1} parent=39 // pred_region
          %238 = dma.done %s231, 128
        $region44: #{tpu_custom_call.1} parent=39 // pred_fallthru
          _
        // Predicated region
        $region45: #{tpu_custom_call.1} parent=39 // pred_check
          %p239 = pneg %p65
        $region46: #{tpu_custom_call.1} parent=39 // pred_check_branch
          %241 = sbr.rel (%p239) target = $region48
        $region47: #{tpu_custom_call.1} parent=39 // pred_region
          %242 = dma.done [#allocation6], 512
        $region48: #{tpu_custom_call.1} parent=39 // pred_fallthru
          _
        // Predicated region
        $region49: #{tpu_custom_call.1} parent=39 // pred_check
          %p243 = pneg %p107
        $region50: #{tpu_custom_call.1} parent=39 // pred_check_branch
          %245 = sbr.rel (%p243) target = $region52
        $region51: #{tpu_custom_call.1} parent=39 // pred_region
          %246 = dma.done [#allocation6], 4096
        $region52: #{tpu_custom_call.1} parent=39 // pred_fallthru
          _
        %s247 = sand.u32 %s31, 1
        %s248 = scalar_lea.sflag [#allocation3], %s247
        %s249 = sand.u32 %s31, 1
        %s250 = smul.addr %s249, 8
        %s251 = scalar_lea.vmem [#allocation2], %s250
        %p252 = pneg %p44
        %p253 = pneg %p41
        %p254 = pneg %p65
        %p255 = pneg %p62
        %p256 = pneg %p86
        %p257 = pneg %p83
        %p258 = pneg %p107
        %p259 = pneg %p104
        %p260 = pneg %p128
        %p261 = pneg %p125
        %p262 = pneg %p154
        %p263 = pneg %p151
        %s264 = sand.u32 %s141, 1
        %s265 = scalar_lea.sflag [#allocation4], %s264
        %s266 = sand.u32 %s141, 1
        %s267 = smul.addr %s266, 16
        %s268 = scalar_lea.vmem [#allocation8], %s267
        %v270 = vld [vmem:[%s234] sm:$0xff]
        %v271 = vpack.c.bf16 %v270, %v270
        %v272 = vld [vmem:[#allocation5] sm:$0xff]
        %v273 = vld [vmem:[#allocation5 + $0x8] sm:$0xff]
        %v274 = vld [vmem:[#allocation5 + $0x10] sm:$0xff]
        %v275 = vld [vmem:[#allocation5 + $0x18] sm:$0xff]
        %v276 = vld [vmem:[%s2] sm:$0x3]
        %v278 = vlaneseq
        %v279 = vshrl.u32 %v278, 7
        %v280 = vsub.s32 0, %v279
        %v281 = vrot.slane %v276, %v280
        %v282 = vlaneseq
        %v283 = vshrl.u32 %v282, 7
        %v284 = vsub.s32 1, %v283
        %v285 = vrot.slane %v276, %v284
        %v292 = vunpack.c.l.b16 %v272
        %v293 = vunpack.c.h.b16 %v272
        %v294 = vunpack.c.l.b16 %v273
        %v295 = vunpack.c.h.b16 %v273
        %v296 = vunpack.c.l.b16 %v274
        %v297 = vunpack.c.h.b16 %v274
        %v298 = vunpack.c.l.b16 %v275
        %v299 = vunpack.c.h.b16 %v275
        %v300 = vpack.c.b16 %v294, %v292
        %v301 = vpack.c.b16 %v295, %v293
        %v302 = vpack.c.b16 %v298, %v296
        %v303 = vpack.c.b16 %v299, %v297
        %vm308 = vcmask 261120
        %v310 = vsel %vm308, %v271, 0
        %312 = vmatprep.subr.bf16.mxu0 0
        %313 = vmatpush1.bf16.msra.mxu0 0
        %314 = vmatprep.subr.bf16.mxu0 0
        %315 = vmatpush1.bf16.msra.mxu0 0
        %316 = vmatprep.subr.bf16.mxu0 0
        %317 = vmatpush1.bf16.msra.mxu0 0
        %318 = vmatprep.subr.bf16.mxu0 0
        %319 = vmatpush1.bf16.msra.mxu0 0
        %320 = vmatprep.subr.bf16.mxu0 0
        %321 = vmatpush1.bf16.msra.mxu0 0
        %322 = vmatprep.subr.bf16.mxu0 0
        %323 = vmatpush1.bf16.msra.mxu0 0
        %324 = vmatprep.subr.bf16.mxu0 %v303
        %325 = vmatpush1.bf16.msra.mxu0 %v302
        %326 = vmatprep.subr.bf16.mxu0 %v301
        %327 = vmatpush1.bf16.msra.mxu0 %v300
        %328 = vmatprep.subr.bf16.mxu0 0
        %329 = vmatpush2.bf16.msra.mxu0 0
        %330 = vmatprep.subr.bf16.mxu0 0
        %331 = vmatpush2.bf16.msra.mxu0 0
        %332 = vmatprep.subr.bf16.mxu0 0
        %333 = vmatpush2.bf16.msra.mxu0 0
        %334 = vmatprep.subr.bf16.mxu0 0
        %335 = vmatpush2.bf16.msra.mxu0 0
        %336 = vmatprep.subr.bf16.mxu0 0
        %337 = vmatpush2.bf16.msra.mxu0 0
        %338 = vmatprep.subr.bf16.mxu0 0
        %339 = vmatpush2.bf16.msra.mxu0 0
        %340 = vmatprep.subr.bf16.mxu0 0
        %341 = vmatpush2.bf16.msra.mxu0 0
        %342 = vmatprep.subr.bf16.mxu0 0
        %343 = vmatpush2.bf16.msra.mxu0 0
        %344 = vmatprep.mubr.bf16.mxu0 0
        %345 = vmatmul.mubr.bf16.gmra.mxu0 %v310
        %v346 = vpop.f32.mrf.mxu0
        %v347 = vadd.f32 %v281, %v346
        %v348 = vpop.f32.mrf.mxu0
        %v349 = vadd.f32 %v285, %v348
        %v350 = vpop.f32.mrf.mxu0
        %v351 = vpop.f32.mrf.mxu0
        %352 = vdwg.mxu0
        %v353 = vmax.f32 %v347, 0.0
        %v354 = vmax.f32 %v349, 0.0
        %v355 = vpack.c.bf16 %v353, %v353
        %v356 = vpack.c.bf16 %v354, %v354
        %v357 = vld [vmem:[#allocation7] sm:$0xff]
        %v358 = vld [vmem:[#allocation7 + $0x8] sm:$0xff]
        %v359 = vld [vmem:[#allocation7 + $0x10] sm:$0xff]
        %v360 = vld [vmem:[#allocation7 + $0x18] sm:$0xff]
        %v361 = vld [vmem:[#allocation7 + $0x20] sm:$0xff]
        %v362 = vld [vmem:[#allocation7 + $0x28] sm:$0xff]
        %v363 = vld [vmem:[#allocation7 + $0x30] sm:$0xff]
        %v364 = vld [vmem:[#allocation7 + $0x38] sm:$0xff]
        %v365 = vld [vmem:[#allocation7 + $0x40] sm:$0xff]
        %v366 = vld [vmem:[#allocation7 + $0x48] sm:$0xff]
        %v367 = vld [vmem:[#allocation7 + $0x50] sm:$0xff]
        %v368 = vld [vmem:[#allocation7 + $0x58] sm:$0xff]
        %v369 = vld [vmem:[#allocation7 + $0x60] sm:$0xff]
        %v370 = vld [vmem:[#allocation7 + $0x68] sm:$0xff]
        %v371 = vld [vmem:[#allocation7 + $0x70] sm:$0xff]
        %v372 = vld [vmem:[#allocation7 + $0x78] sm:$0xff]
        %v373 = vld [vmem:[#allocation7 + $0x80] sm:$0xff]
        %v374 = vld [vmem:[#allocation7 + $0x88] sm:$0xff]
        %v375 = vld [vmem:[#allocation7 + $0x90] sm:$0xff]
        %v376 = vld [vmem:[#allocation7 + $0x98] sm:$0xff]
        %v377 = vld [vmem:[#allocation7 + $0xa0] sm:$0xff]
        %v378 = vld [vmem:[#allocation7 + $0xa8] sm:$0xff]
        %v379 = vld [vmem:[#allocation7 + $0xb0] sm:$0xff]
        %v380 = vld [vmem:[#allocation7 + $0xb8] sm:$0xff]
        %v381 = vld [vmem:[#allocation7 + $0xc0] sm:$0xff]
        %v382 = vld [vmem:[#allocation7 + $0xc8] sm:$0xff]
        %v383 = vld [vmem:[#allocation7 + $0xd0] sm:$0xff]
        %v384 = vld [vmem:[#allocation7 + $0xd8] sm:$0xff]
        %v385 = vld [vmem:[#allocation7 + $0xe0] sm:$0xff]
        %v386 = vld [vmem:[#allocation7 + $0xe8] sm:$0xff]
        %v387 = vld [vmem:[#allocation7 + $0xf0] sm:$0xff]
        %v388 = vld [vmem:[#allocation7 + $0xf8] sm:$0xff]
        %v389 = vld [vmem:[%s4] sm:$0x3]
        %v391 = vlaneseq
        %v392 = vshrl.u32 %v391, 7
        %v393 = vsub.s32 0, %v392
        %v394 = vrot.slane %v389, %v393
        %v395 = vlaneseq
        %v396 = vshrl.u32 %v395, 7
        %v397 = vsub.s32 1, %v396
        %v398 = vrot.slane %v389, %v397
        %v433 = vunpack.c.l.b16 %v357
        %v434 = vunpack.c.h.b16 %v357
        %v435 = vunpack.c.l.b16 %v358
        %v436 = vunpack.c.h.b16 %v358
        %v437 = vunpack.c.l.b16 %v359
        %v438 = vunpack.c.h.b16 %v359
        %v439 = vunpack.c.l.b16 %v360
        %v440 = vunpack.c.h.b16 %v360
        %v441 = vunpack.c.l.b16 %v361
        %v442 = vunpack.c.h.b16 %v361
        %v443 = vunpack.c.l.b16 %v362
        %v444 = vunpack.c.h.b16 %v362
        %v445 = vunpack.c.l.b16 %v363
        %v446 = vunpack.c.h.b16 %v363
        %v447 = vunpack.c.l.b16 %v364
        %v448 = vunpack.c.h.b16 %v364
        %v449 = vunpack.c.l.b16 %v365
        %v450 = vunpack.c.h.b16 %v365
        %v451 = vunpack.c.l.b16 %v366
        %v452 = vunpack.c.h.b16 %v366
        %v453 = vunpack.c.l.b16 %v367
        %v454 = vunpack.c.h.b16 %v367
        %v455 = vunpack.c.l.b16 %v368
        %v456 = vunpack.c.h.b16 %v368
        %v457 = vunpack.c.l.b16 %v369
        %v458 = vunpack.c.h.b16 %v369
        %v459 = vunpack.c.l.b16 %v370
        %v460 = vunpack.c.h.b16 %v370
        %v461 = vunpack.c.l.b16 %v371
        %v462 = vunpack.c.h.b16 %v371
        %v463 = vunpack.c.l.b16 %v372
        %v464 = vunpack.c.h.b16 %v372
        %v465 = vunpack.c.l.b16 %v373
        %v466 = vunpack.c.h.b16 %v373
        %v467 = vunpack.c.l.b16 %v374
        %v468 = vunpack.c.h.b16 %v374
        %v469 = vunpack.c.l.b16 %v375
        %v470 = vunpack.c.h.b16 %v375
        %v471 = vunpack.c.l.b16 %v376
        %v472 = vunpack.c.h.b16 %v376
        %v473 = vunpack.c.l.b16 %v377
        %v474 = vunpack.c.h.b16 %v377
        %v475 = vunpack.c.l.b16 %v378
        %v476 = vunpack.c.h.b16 %v378
        %v477 = vunpack.c.l.b16 %v379
        %v478 = vunpack.c.h.b16 %v379
        %v479 = vunpack.c.l.b16 %v380
        %v480 = vunpack.c.h.b16 %v380
        %v481 = vunpack.c.l.b16 %v381
        %v482 = vunpack.c.h.b16 %v381
        %v483 = vunpack.c.l.b16 %v382
        %v484 = vunpack.c.h.b16 %v382
        %v485 = vunpack.c.l.b16 %v383
        %v486 = vunpack.c.h.b16 %v383
        %v487 = vunpack.c.l.b16 %v384
        %v488 = vunpack.c.h.b16 %v384
        %v489 = vunpack.c.l.b16 %v385
        %v490 = vunpack.c.h.b16 %v385
        %v491 = vunpack.c.l.b16 %v386
        %v492 = vunpack.c.h.b16 %v386
        %v493 = vunpack.c.l.b16 %v387
        %v494 = vunpack.c.h.b16 %v387
        %v495 = vunpack.c.l.b16 %v388
        %v496 = vunpack.c.h.b16 %v388
        %v497 = vpack.c.b16 %v435, %v433
        %v498 = vpack.c.b16 %v436, %v434
        %v499 = vpack.c.b16 %v439, %v437
        %v500 = vpack.c.b16 %v440, %v438
        %v501 = vpack.c.b16 %v443, %v441
        %v502 = vpack.c.b16 %v444, %v442
        %v503 = vpack.c.b16 %v447, %v445
        %v504 = vpack.c.b16 %v448, %v446
        %v505 = vpack.c.b16 %v451, %v449
        %v506 = vpack.c.b16 %v452, %v450
        %v507 = vpack.c.b16 %v455, %v453
        %v508 = vpack.c.b16 %v456, %v454
        %v509 = vpack.c.b16 %v459, %v457
        %v510 = vpack.c.b16 %v460, %v458
        %v511 = vpack.c.b16 %v463, %v461
        %v512 = vpack.c.b16 %v464, %v462
        %v513 = vpack.c.b16 %v467, %v465
        %v514 = vpack.c.b16 %v468, %v466
        %v515 = vpack.c.b16 %v471, %v469
        %v516 = vpack.c.b16 %v472, %v470
        %v517 = vpack.c.b16 %v475, %v473
        %v518 = vpack.c.b16 %v476, %v474
        %v519 = vpack.c.b16 %v479, %v477
        %v520 = vpack.c.b16 %v480, %v478
        %v521 = vpack.c.b16 %v483, %v481
        %v522 = vpack.c.b16 %v484, %v482
        %v523 = vpack.c.b16 %v487, %v485
        %v524 = vpack.c.b16 %v488, %v486
        %v525 = vpack.c.b16 %v491, %v489
        %v526 = vpack.c.b16 %v492, %v490
        %v527 = vpack.c.b16 %v495, %v493
        %v528 = vpack.c.b16 %v496, %v494
        %561 = vmatprep.subr.bf16.mxu0 %v512
        %562 = vmatpush1.bf16.msra.mxu0 %v511
        %563 = vmatprep.subr.bf16.mxu0 %v510
        %564 = vmatpush1.bf16.msra.mxu0 %v509
        %565 = vmatprep.subr.bf16.mxu0 %v508
        %566 = vmatpush1.bf16.msra.mxu0 %v507
        %567 = vmatprep.subr.bf16.mxu0 %v506
        %568 = vmatpush1.bf16.msra.mxu0 %v505
        %569 = vmatprep.subr.bf16.mxu0 %v504
        %570 = vmatpush1.bf16.msra.mxu0 %v503
        %571 = vmatprep.subr.bf16.mxu0 %v502
        %572 = vmatpush1.bf16.msra.mxu0 %v501
        %573 = vmatprep.subr.bf16.mxu0 %v500
        %574 = vmatpush1.bf16.msra.mxu0 %v499
        %575 = vmatprep.subr.bf16.mxu0 %v498
        %576 = vmatpush1.bf16.msra.mxu0 %v497
        %577 = vmatprep.subr.bf16.mxu0 %v528
        %578 = vmatpush2.bf16.msra.mxu0 %v527
        %579 = vmatprep.subr.bf16.mxu0 %v526
        %580 = vmatpush2.bf16.msra.mxu0 %v525
        %581 = vmatprep.subr.bf16.mxu0 %v524
        %582 = vmatpush2.bf16.msra.mxu0 %v523
        %583 = vmatprep.subr.bf16.mxu0 %v522
        %584 = vmatpush2.bf16.msra.mxu0 %v521
        %585 = vmatprep.subr.bf16.mxu0 %v520
        %586 = vmatpush2.bf16.msra.mxu0 %v519
        %587 = vmatprep.subr.bf16.mxu0 %v518
        %588 = vmatpush2.bf16.msra.mxu0 %v517
        %589 = vmatprep.subr.bf16.mxu0 %v516
        %590 = vmatpush2.bf16.msra.mxu0 %v515
        %591 = vmatprep.subr.bf16.mxu0 %v514
        %592 = vmatpush2.bf16.msra.mxu0 %v513
        %593 = vmatprep.mubr.bf16.mxu0 %v356
        %594 = vmatmul.mubr.bf16.gmra.mxu0 %v355
        %v595 = vpop.f32.mrf.mxu0
        %v596 = vadd.f32 %v394, %v595
        %v597 = vpop.f32.mrf.mxu0
        %v598 = vadd.f32 %v398, %v597
        %v599 = vpop.f32.mrf.mxu0
        %v600 = vpop.f32.mrf.mxu0
        %601 = vdwg.mxu0
        %602 = vst [vmem:[%s268] sm:$0xff] %v596
        %603 = vst [vmem:[%s268 + $0x8] sm:$0xff] %v598
        %s604 = sand.u32 %s141, 1
        %s605 = scalar_lea.sflag [#allocation4], %s604
        %s606 = sand.u32 %s141, 1
        %s607 = smul.addr %s606, 16
        %s608 = scalar_lea.vmem [#allocation8], %s607
        // Predicated region
        $region53: #{tpu_custom_call.1} parent=39 // pred_check
          %p609 = pneg %p151
        $region54: #{tpu_custom_call.1} parent=39 // pred_check_branch
          %611 = sbr.rel (%p609) target = $region56
        $region55: #{tpu_custom_call.1} parent=39 // pred_region
          %s613 = ssub.s32 256, 256
          %614 = vsyncadd %s605, %s613
          %s615 = smul.addr %s23, 2
          %s616 = smul.addr %s615, 128
          %s617 = scalar_lea.hbm %s5, %s616
          %s619 = sshll.u32 %s608, 4
          %s620 = int_to_ptr.vmem [resolvable:$true] %s619
          %622 = dma.vmem_to_hbm [thread:$0]  %s620, 256, %s617, %s605
        $region56: #{tpu_custom_call.1} parent=39 // pred_fallthru
          _
      $region40: #{tpu_custom_call.1} parent=5 // pred_fallthru
        _
      %p623 = scmp.le.s32.totalorder 2, %s18
      // Predicated region
      $region57: #{tpu_custom_call.1} parent=5 // pred_check
        %p624 = pneg %p623
      $region58: #{tpu_custom_call.1} parent=5 // pred_check_branch
        %626 = sbr.rel (%p624) target = $region60
      $region59: #{tpu_custom_call.1} parent=5 // pred_region
        %s627 = ssub.s32 %s18, 2
        // Predicated region
        $region61: #{tpu_custom_call.1} parent=59 // pred_check
          %p628 = pneg %p157
        $region62: #{tpu_custom_call.1} parent=59 // pred_check_branch
          %630 = sbr.rel (%p628) target = $region64
        $region63: #{tpu_custom_call.1} parent=59 // pred_region
          %s631 = sand.u32 %s142, 1
          %s632 = scalar_lea.sflag [#allocation4], %s631
          %s633 = sand.u32 %s142, 1
          %s634 = smul.addr %s633, 16
          %s635 = scalar_lea.vmem [#allocation8], %s634
          %636 = dma.done %s632, 256
        $region64: #{tpu_custom_call.1} parent=59 // pred_fallthru
          _
      $region60: #{tpu_custom_call.1} parent=5 // pred_fallthru
        _
    $region6: #{tpu_custom_call.1} parent=1 // loop_footer
      %s22 = sadd.s32 1, %s18
    $region7: #{tpu_custom_call.1} parent=1 // loop_footer_branch
      %17 = sbr.rel target = $region3
    $region8: #{tpu_custom_call.1} parent=1 // loop_exit
      _
    %637 = vsyncpa [#allocation3], 1
    %s638 = scalar_lea.sflag [#allocation3], 1
    %639 = vsyncpa %s638, 1
    %640 = vsyncpa [#allocation6], 1
    %641 = vsyncpa [#allocation4], 1
    %s642 = scalar_lea.sflag [#allocation4], 1
    %643 = vsyncpa %s642, 1

</llo_original>
